<compile_context>
chip_gen: v7x
topology: tpu7x:2x2x1
jax: 0.10.0
libtpu: 0.0.40
codegen_flags: <defaults>
</compile_context>

<pallas_src>
import functools

import jax
import jax.numpy as jnp
from jax.experimental import pallas as pl
from jax.experimental.pallas import tpu as pltpu

D_BERT = 768  # bert-base hidden size (speaker embedding dim, GRU input size)
GP = 128      # padded fused-gate lane width (3H = 96 -> 128)
CP = 128      # padded output lane width   (num_classes -> 128)


# ----------------------------- Pallas kernel ------------------------------ #
def _encoder_head_kernel(x_ref, w_ref, b_ref, out_ref, *, hidden, bp):
    """x_ref: (2*bp, 768) bf16   rows [0:bp]  = pooled + speaker_emb
                                 rows [bp:2bp]= pooled_ctx + prev_speaker_emb
       w_ref: (768 + 2H, 128) bf16  rows [0:768]      fused GRU gate weights (r|z|n, padded)
                                    rows [768:768+H]  fc1 folded into fc2[:, :H]   (padded)
                                    rows [768+H:+2H]  fc2[:, H:2H]                 (padded)
       b_ref: (8, 128) f32          row 0: (b_ir+b_hr | b_iz+b_hz | b_in | 0)
                                    row 1: b_hn (first H lanes)
                                    row 2: fc1_b @ fc2_wa + fc2_b (first C lanes)
       out_ref: (bp, 128) f32
    """
    H = hidden
    x = x_ref[...]                                                     # (2bp, 768) bf16

    # single fused gate matmul for BOTH streams: (2bp,768) x (768,128) -> f32
    g = jnp.dot(x, w_ref[0:D_BERT, :], preferred_element_type=jnp.float32)
    g = g + b_ref[0:1, :]                                              # fused input+recurrent biases

    # PyTorch GRU, gate order r|z|n, single step with h0 == 0:
    #   r = sigmoid(i_r + b_hr); z = sigmoid(i_z + b_hz); n = tanh(i_n + r*b_hn); h = (1-z)*n
    r = jax.nn.sigmoid(g[:, 0:H])
    z = jax.nn.sigmoid(g[:, H:2 * H])
    n = jnp.tanh(g[:, 2 * H:3 * H] + r * b_ref[1:2, 0:H])
    h = (1.0 - z) * n                                                  # (2bp, H) f32; z*h0 == 0

    h_main = h[0:bp].astype(jnp.bfloat16)                              # sublane-aligned row blocks
    h_ctx = h[bp:2 * bp].astype(jnp.bfloat16)

    # tail: fc2(cat(fc1(h_main), h_ctx)) with fc1 pre-folded into the first weight block
    out_ref[...] = (
        jnp.dot(h_main, w_ref[D_BERT:D_BERT + H, :], preferred_element_type=jnp.float32)
        + jnp.dot(h_ctx, w_ref[D_BERT + H:D_BERT + 2 * H, :], preferred_element_type=jnp.float32)
        + b_ref[2:3, :]
    )


def gru_speaker_encoder_head(pooled, ctx_pooled, spk_emb, prev_spk_emb, params):
    """Whole post-BERT forward in one Pallas call (3 packed inputs, 1 padded output)."""
    B = pooled.shape[0]
    H = params["hidden_size"]
    C = params["num_classes"]
    Bp = ((B + 7) // 8) * 8                                            # pad batch to f32 sublane tile

    # pack + pad activations: main stream rows [0:Bp], context stream rows [Bp:2Bp]
    x_main = jnp.zeros((Bp, D_BERT), jnp.float32).at[:B].set(pooled + spk_emb)
    x_ctx = jnp.zeros((Bp, D_BERT), jnp.float32).at[:B].set(ctx_pooled + prev_spk_emb)
    x = jnp.concatenate([x_main, x_ctx], axis=0).astype(jnp.bfloat16)  # (2Bp, 768)

    w = params["w_packed"]                                             # (768+2H, 128) bf16
    b = params["b_packed"]                                             # (8, 128) f32

    flops = 2 * (2 * Bp * D_BERT * GP + 2 * Bp * H * CP)
    bytes_accessed = x.size * 2 + w.size * 2 + b.size * 4 + Bp * CP * 4
    kernel = functools.partial(_encoder_head_kernel, hidden=H, bp=Bp)
    vmem = pl.BlockSpec(memory_space=pltpu.MemorySpace.VMEM)

    out = pl.pallas_call(
        kernel,
        out_shape=jax.ShapeDtypeStruct((Bp, CP), jnp.float32),
        in_specs=[vmem, vmem, vmem],
        out_specs=vmem,
        cost_estimate=pl.CostEstimate(
            flops=int(flops),
            transcendentals=int(2 * Bp * 3 * H),
            bytes_accessed=int(bytes_accessed),
        ),
    )(x, w, b)
    return out[:B, :C]


# ------------------------- parameter initialization ----------------------- #
def init_params(key, hidden_size, num_classes, num_speakers=2, vocab_size=100):
    """Deterministic synthetic params matching the torch module's shapes, then fused/packed."""
    H, C = hidden_size, num_classes
    keys = jax.random.split(key, 12)

    def unif(k, shape, fan_in):
        bound = 1.0 / jnp.sqrt(jnp.float32(fan_in))
        return jax.random.uniform(k, shape, jnp.float32, -bound, bound)

    p = {"hidden_size": H, "num_classes": C}
    # nn.Embedding(num_speakers, 768) -> N(0, 1) like torch default
    p["speaker_embedding"] = jax.random.normal(keys[0], (num_speakers, D_BERT), jnp.float32)
    # Stand-in "BERT" pooler params (see TODO below); deterministic, not a checkpoint.
    p["tok_emb"] = 0.02 * jax.random.normal(keys[1], (vocab_size, D_BERT), jnp.float32)
    p["pooler_w"] = unif(keys[2], (D_BERT, D_BERT), D_BERT)
    p["pooler_b"] = unif(keys[3], (1, D_BERT), D_BERT)

    # torch-style raw params (kept for the pure-JAX reference check)
    w_ih = unif(keys[4], (3 * H, D_BERT), H)       # weight_ih_l0, gate order r|z|n
    b_ih = unif(keys[5], (3 * H,), H)
    b_hh = unif(keys[6], (3 * H,), H)              # weight_hh_l0 contributes W_hh@h0 == 0 (h0 == 0)
    fc1_w = unif(keys[7], (H, H), H)
    fc1_b = unif(keys[8], (H,), H)
    fc2_w = unif(keys[9], (C, 2 * H), 2 * H)
    fc2_b = unif(keys[10], (C,), 2 * H)
    p["raw"] = dict(w_ih=w_ih, b_ih=b_ih, b_hh=b_hh,
                    fc1_w=fc1_w, fc1_b=fc1_b, fc2_w=fc2_w, fc2_b=fc2_b)

    # --- host-side fusion / packing for the kernel ---
    w_gates = jnp.pad(w_ih.T, ((0, 0), (0, GP - 3 * H)))               # (768, 128), cols r|z|n
    fc2_wt = fc2_w.T                                                   # (2H, C)
    w_tail_main = fc1_w.T @ fc2_wt[:H]                                 # fc1 folded into fc2 (exact: no nonlinearity)
    w_tail_ctx = fc2_wt[H:]
    w_tail_main = jnp.pad(w_tail_main, ((0, 0), (0, CP - C)))          # (H, 128)
    w_tail_ctx = jnp.pad(w_tail_ctx, ((0, 0), (0, CP - C)))            # (H, 128)
    p["w_packed"] = jnp.concatenate(
        [w_gates, w_tail_main, w_tail_ctx], axis=0).astype(jnp.bfloat16)  # (768+2H, 128) bf16

    b_gates = jnp.concatenate(
        [b_ih[:H] + b_hh[:H], b_ih[H:2 * H] + b_hh[H:2 * H], b_ih[2 * H:]])  # r|z|n fused biases
    b_out = fc1_b @ fc2_wt[:H] + fc2_b                                 # fused tail bias
    b_packed = jnp.zeros((8, 128), jnp.float32)
    b_packed = b_packed.at[0, :3 * H].set(b_gates)
    b_packed = b_packed.at[1, :H].set(b_hh[2 * H:])                    # b_hn (scaled by r in-kernel)
    b_packed = b_packed.at[2, :C].set(b_out)
    p["b_packed"] = b_packed
    return p


# --------------------------- BERT stand-in (glue) -------------------------- #
def standin_bert_pooler(input_ids, attention_mask, params):
    # TODO(synk): the frozen pretrained BertModel forward has no clean Pallas equivalent
    # here; this deterministic stand-in (token embedding + masked mean + tanh(dense))
    # produces the (B, 768) pooler_output consumed by the kernel.
    emb = params["tok_emb"][input_ids]                       # (B, S, 768)
    mask = attention_mask[..., None].astype(jnp.float32)     # (B, S, 1)
    mean = (emb * mask).sum(axis=1) / jnp.maximum(mask.sum(axis=1), 1.0)
    return jnp.tanh(mean @ params["pooler_w"] + params["pooler_b"])


# ------------------------ pure-JAX f32 reference --------------------------- #
def reference_head(pooled, ctx_pooled, spk, prev_spk, raw, H):
    def gru(x):
        gi = x @ raw["w_ih"].T + raw["b_ih"]
        r = jax.nn.sigmoid(gi[:, :H] + raw["b_hh"][:H])
        z = jax.nn.sigmoid(gi[:, H:2 * H] + raw["b_hh"][H:2 * H])
        n = jnp.tanh(gi[:, 2 * H:] + r * raw["b_hh"][2 * H:])
        return (1.0 - z) * n
    h_main = gru(pooled + spk)
    h_ctx = gru(ctx_pooled + prev_spk)
    out1 = h_main @ raw["fc1_w"].T + raw["fc1_b"]
    return jnp.concatenate([out1, h_ctx], axis=1) @ raw["fc2_w"].T + raw["fc2_b"]


# --------------------------------- main ----------------------------------- #
if __name__ == "__main__":
    B, S = 2, 8            # batch, token sequence length
    HIDDEN, NUM_CLASSES = 32, 8
    NUM_SPEAKERS, VOCAB = 2, 100

    key = jax.random.PRNGKey(0)
    pkey, dkey = jax.random.split(key)
    params = init_params(pkey, HIDDEN, NUM_CLASSES, NUM_SPEAKERS, VOCAB)

    k1, k2, k3, k4 = jax.random.split(dkey, 4)
    input_ids = jax.random.randint(k1, (B, S), 0, VOCAB)
    attention_mask = jnp.ones((B, S), jnp.int32)
    context_ids = jax.random.randint(k2, (B, S), 0, VOCAB)
    context_mask = jnp.ones((B, S), jnp.int32)
    prev_speakers = jax.random.randint(k3, (B,), 0, NUM_SPEAKERS)
    speakers = jax.random.randint(k4, (B,), 0, NUM_SPEAKERS)

    # glue: BERT stand-in poolers + speaker-embedding gathers
    pooled_output = standin_bert_pooler(input_ids, attention_mask, params)       # (B, 768)
    pooled_context = standin_bert_pooler(context_ids, context_mask, params)      # (B, 768)
    speaker_emb = params["speaker_embedding"][speakers]                           # (B, 768)
    prev_speaker_emb = params["speaker_embedding"][prev_speakers]                 # (B, 768)

    # Pallas hot path: fused GRU gates (both streams), fc1⊕fc2 tail
    logits = gru_speaker_encoder_head(
        pooled_output, pooled_context, speaker_emb, prev_speaker_emb, params
    )
    logits = jax.block_until_ready(logits)

    ref = reference_head(pooled_output, pooled_context, speaker_emb,
                         prev_speaker_emb, params["raw"], HIDDEN)
    max_err = float(jnp.max(jnp.abs(logits - ref)))
    assert logits.shape == (B, NUM_CLASSES)
    assert logits.dtype == jnp.float32
    assert max_err < 0.2, f"max abs err vs f32 reference = {max_err}"
    print("KERNEL_OK")
</pallas_src>

<mosaic_0001>
module attributes {stable_mosaic.version = 11 : i64} {
  func.func @_encoder_head_kernel(%arg0: memref<16x768xbf16, #tpu.memory_space<vmem>>, %arg1: memref<832x128xbf16, #tpu.memory_space<vmem>>, %arg2: memref<8x128xf32, #tpu.memory_space<vmem>>, %arg3: memref<8x128xf32, #tpu.memory_space<vmem>>) attributes {dimension_semantics = [], scalar_prefetch = 0 : i64, scratch_operands = 0 : i64, tpu.core_type = #tpu.core_type<tc>} {
    %c0 = arith.constant 0 : index
    %c0_0 = arith.constant 0 : index
    %0 = vector.load %arg0[%c0, %c0_0] : memref<16x768xbf16, #tpu.memory_space<vmem>>, vector<16x768xbf16>
    %c0_1 = arith.constant 0 : index
    %c0_2 = arith.constant 0 : index
    %1 = vector.load %arg1[%c0_1, %c0_2] : memref<832x128xbf16, #tpu.memory_space<vmem>>, vector<768x128xbf16>
    %cst = arith.constant dense<0.000000e+00> : vector<16x128xf32>
    %2 = tpu.matmul %0, %1, %cst {dimension_numbers = #tpu.dot_dimension_numbers<[1], [0], [0], [1], [0, 0, 1, 1], [], []>} : vector<16x768xbf16>, vector<768x128xbf16>, vector<16x128xf32> -> vector<16x128xf32>
    %c0_3 = arith.constant 0 : index
    %c0_4 = arith.constant 0 : index
    %3 = vector.load %arg2[%c0_3, %c0_4] : memref<8x128xf32, #tpu.memory_space<vmem>>, vector<1x128xf32>
    %4 = vector.broadcast %3 : vector<1x128xf32> to vector<16x128xf32>
    %5 = arith.addf %2, %4 : vector<16x128xf32>
    %6 = vector.extract_strided_slice %5 {offsets = [0, 0], sizes = [16, 32], strides = [1, 1]} : vector<16x128xf32> to vector<16x32xf32>
    %7 = arith.negf %6 : vector<16x32xf32>
    %8 = math.exp %7 : vector<16x32xf32>
    %cst_5 = arith.constant 1.000000e+00 : f32
    %9 = vector.broadcast %cst_5 : f32 to vector<16x32xf32>
    %10 = arith.addf %9, %8 : vector<16x32xf32>
    %11 = arith.divf %9, %10 : vector<16x32xf32>
    %12 = vector.extract_strided_slice %5 {offsets = [0, 32], sizes = [16, 32], strides = [1, 1]} : vector<16x128xf32> to vector<16x32xf32>
    %13 = arith.negf %12 : vector<16x32xf32>
    %14 = math.exp %13 : vector<16x32xf32>
    %cst_6 = arith.constant 1.000000e+00 : f32
    %15 = vector.broadcast %cst_6 : f32 to vector<16x32xf32>
    %16 = arith.addf %15, %14 : vector<16x32xf32>
    %17 = arith.divf %15, %16 : vector<16x32xf32>
    %18 = vector.extract_strided_slice %5 {offsets = [0, 64], sizes = [16, 32], strides = [1, 1]} : vector<16x128xf32> to vector<16x32xf32>
    %c1 = arith.constant 1 : index
    %c0_7 = arith.constant 0 : index
    %19 = vector.load %arg2[%c1, %c0_7] : memref<8x128xf32, #tpu.memory_space<vmem>>, vector<1x32xf32>
    %20 = vector.broadcast %19 : vector<1x32xf32> to vector<16x32xf32>
    %21 = arith.mulf %11, %20 : vector<16x32xf32>
    %22 = arith.addf %18, %21 : vector<16x32xf32>
    %23 = math.tanh %22 : vector<16x32xf32>
    %cst_8 = arith.constant 1.000000e+00 : f32
    %24 = vector.broadcast %cst_8 : f32 to vector<16x32xf32>
    %25 = arith.subf %24, %17 : vector<16x32xf32>
    %26 = arith.mulf %25, %23 : vector<16x32xf32>
    %27 = vector.extract_strided_slice %26 {offsets = [0, 0], sizes = [8, 32], strides = [1, 1]} : vector<16x32xf32> to vector<8x32xf32>
    %28 = arith.truncf %27 : vector<8x32xf32> to vector<8x32xbf16>
    %29 = vector.extract_strided_slice %26 {offsets = [8, 0], sizes = [8, 32], strides = [1, 1]} : vector<16x32xf32> to vector<8x32xf32>
    %30 = arith.truncf %29 : vector<8x32xf32> to vector<8x32xbf16>
    %c768 = arith.constant 768 : index
    %c0_9 = arith.constant 0 : index
    %31 = vector.load %arg1[%c768, %c0_9] : memref<832x128xbf16, #tpu.memory_space<vmem>>, vector<32x128xbf16>
    %cst_10 = arith.constant dense<0.000000e+00> : vector<8x128xf32>
    %32 = tpu.matmul %28, %31, %cst_10 {dimension_numbers = #tpu.dot_dimension_numbers<[1], [0], [0], [1], [0, 0, 1, 1], [], []>} : vector<8x32xbf16>, vector<32x128xbf16>, vector<8x128xf32> -> vector<8x128xf32>
    %c800 = arith.constant 800 : index
    %c0_11 = arith.constant 0 : index
    %33 = vector.load %arg1[%c800, %c0_11] : memref<832x128xbf16, #tpu.memory_space<vmem>>, vector<32x128xbf16>
    %cst_12 = arith.constant dense<0.000000e+00> : vector<8x128xf32>
    %34 = tpu.matmul %30, %33, %cst_12 {dimension_numbers = #tpu.dot_dimension_numbers<[1], [0], [0], [1], [0, 0, 1, 1], [], []>} : vector<8x32xbf16>, vector<32x128xbf16>, vector<8x128xf32> -> vector<8x128xf32>
    %35 = arith.addf %32, %34 : vector<8x128xf32>
    %c2 = arith.constant 2 : index
    %c0_13 = arith.constant 0 : index
    %36 = vector.load %arg2[%c2, %c0_13] : memref<8x128xf32, #tpu.memory_space<vmem>>, vector<1x128xf32>
    %37 = vector.broadcast %36 : vector<1x128xf32> to vector<8x128xf32>
    %38 = arith.addf %35, %37 : vector<8x128xf32>
    %c0_14 = arith.constant 0 : index
    %c0_15 = arith.constant 0 : index
    %39 = vector.load %arg3[%c0_14, %c0_15] : memref<8x128xf32, #tpu.memory_space<vmem>>, vector<8x128xf32>
    tpu.vector_store %arg3[%c0_14, %c0_15], %38 {strides = array<i32>} : memref<8x128xf32, #tpu.memory_space<vmem>>, vector<8x128xf32>,
    return
  }
}

</mosaic_0001>

<llo_original>
// kernel: tpu_custom_call.1
$region0: #{tpu_custom_call.1}
  #allocation0 [shape = 'u32[]', space=smem, size = 0x4, offset = 0x4, fixed_abs, tag = 'smem constant byte address 0x4 - core index']
  #allocation1 [shape = 'u32[144,128]{1,0:T(1,128)}', space=vmem, size = 0x12000, scoped, tag = 'internal scratch']
  %s0 = inlined_call_operand.hbm [shape: bf16[16,768], index: 0, kind: input, shape index: {}]
  %s1 = inlined_call_operand.hbm [shape: bf16[832,128], index: 1, kind: input, shape index: {}]
  %s2 = inlined_call_operand.hbm [shape: f32[8,128], index: 2, kind: input, shape index: {}]
  %s3 = inlined_call_operand.hbm [shape: f32[8,128], index: 3, kind: output, shape index: {}]
  %s4 = sld [smem:[#allocation0]]
  $region34: #{tpu_custom_call.1} parent=0
    _
  %s6 = ssub.s32 1, %s4
  %s7 = scalar_select 0, %s6, %s4
  $region1: #{tpu_custom_call.1} parent=0
    #allocation2 [shape = 'u8[24576]{0}', space=vmem, size = 0x6000, scoped, tag = 'input window, operand 0, single buffered']
    #allocation3 [shape = 's32[1]{0}', space=sflag, size = 0x4, scoped, tag = 'scoped memory for tpu_custom_call.1']
    #allocation4 [shape = 's32[1]{0}', space=sflag, size = 0x4, scoped, tag = 'scoped memory for tpu_custom_call.1']
    #allocation5 [shape = 'u8[212992]{0}', space=vmem, size = 0x34000, scoped, tag = 'input window, operand 1, single buffered']
    #allocation6 [shape = 's32[1]{0}', space=sflag, size = 0x4, scoped, tag = 'scoped memory for tpu_custom_call.1']
    #allocation7 [shape = 'u8[4096]{0}', space=vmem, size = 0x1000, scoped, tag = 'input window, operand 2, single buffered']
    #allocation8 [shape = 'u8[4096]{0}', space=vmem, size = 0x1000, scoped, tag = 'output window, operand 0, single buffered']
    %8 = vsyncpa [#allocation3], 0
    %9 = vsyncpa [#allocation6], 0
    %10 = vsyncpa [#allocation4], 0
    // Predicated region
    $region2: #{tpu_custom_call.1} parent=1 // pred_check
      _
    $region3: #{tpu_custom_call.1} parent=1 // pred_check_branch
      %12 = sbr.rel (0) target = $region5
    $region4: #{tpu_custom_call.1} parent=1 // pred_region
      %s14 = ssub.s32 768, 768
      %15 = vsyncadd [#allocation3], %s14
      %s16 = sshll.u32 [#allocation2], 4
      %s17 = int_to_ptr.vmem [resolvable:$true] %s16
      %22 = dma.hbm_to_vmem [thread:$0]  %s0, 768, %s17, [#allocation3], 384, 384, 24
    $region5: #{tpu_custom_call.1} parent=1 // pred_fallthru
      _
    // Predicated region
    $region6: #{tpu_custom_call.1} parent=1 // pred_check
      _
    $region7: #{tpu_custom_call.1} parent=1 // pred_check_branch
      %24 = sbr.rel (0) target = $region9
    $region8: #{tpu_custom_call.1} parent=1 // pred_region
      %s26 = ssub.s32 6656, 6656
      %27 = vsyncadd [#allocation6], %s26
      %s28 = sshll.u32 [#allocation5], 4
      %s29 = int_to_ptr.vmem [resolvable:$true] %s28
      %34 = dma.hbm_to_vmem [thread:$0]  %s1, 6656, %s29, [#allocation6], 64, 64, 4
    $region9: #{tpu_custom_call.1} parent=1 // pred_fallthru
      _
    // Predicated region
    $region10: #{tpu_custom_call.1} parent=1 // pred_check
      _
    $region11: #{tpu_custom_call.1} parent=1 // pred_check_branch
      %36 = sbr.rel (0) target = $region13
    $region12: #{tpu_custom_call.1} parent=1 // pred_region
      %s38 = ssub.s32 128, 128
      %39 = vsyncadd [#allocation6], %s38
      %s41 = sshll.u32 [#allocation7], 4
      %s42 = int_to_ptr.vmem [resolvable:$true] %s41
      %44 = dma.hbm_to_vmem [thread:$0]  %s2, 128, %s42, [#allocation6]
    $region13: #{tpu_custom_call.1} parent=1 // pred_fallthru
      _
    // Predicated region
    $region14: #{tpu_custom_call.1} parent=1 // pred_check
      _
    $region15: #{tpu_custom_call.1} parent=1 // pred_check_branch
      %46 = sbr.rel (0) target = $region17
    $region16: #{tpu_custom_call.1} parent=1 // pred_region
      %47 = dma.done [#allocation3], 768
    $region17: #{tpu_custom_call.1} parent=1 // pred_fallthru
      _
    // Predicated region
    $region18: #{tpu_custom_call.1} parent=1 // pred_check
      _
    $region19: #{tpu_custom_call.1} parent=1 // pred_check_branch
      %49 = sbr.rel (0) target = $region21
    $region20: #{tpu_custom_call.1} parent=1 // pred_region
      %50 = dma.done [#allocation6], 6656
    $region21: #{tpu_custom_call.1} parent=1 // pred_fallthru
      _
    // Predicated region
    $region22: #{tpu_custom_call.1} parent=1 // pred_check
      _
    $region23: #{tpu_custom_call.1} parent=1 // pred_check_branch
      %52 = sbr.rel (0) target = $region25
    $region24: #{tpu_custom_call.1} parent=1 // pred_region
      %53 = dma.done [#allocation6], 128
    $region25: #{tpu_custom_call.1} parent=1 // pred_fallthru
      _
    %v55 = vld [vmem:[#allocation2] sm:$0xff]
    %v56 = vld [vmem:[#allocation2 + $0x8] sm:$0xff]
    %v57 = vld [vmem:[#allocation2 + $0x10] sm:$0xff]
    %v58 = vld [vmem:[#allocation2 + $0x18] sm:$0xff]
    %v59 = vld [vmem:[#allocation2 + $0x20] sm:$0xff]
    %v60 = vld [vmem:[#allocation2 + $0x28] sm:$0xff]
    %v61 = vld [vmem:[#allocation5] sm:$0xf]
    %v62 = vld [vmem:[#allocation5 + $0x4] sm:$0xf]
    %v63 = vld [vmem:[#allocation5 + $0x8] sm:$0xf]
    %v64 = vld [vmem:[#allocation5 + $0xc] sm:$0xf]
    %v65 = vld [vmem:[#allocation5 + $0x10] sm:$0xf]
    %v66 = vld [vmem:[#allocation5 + $0x14] sm:$0xf]
    %v67 = vld [vmem:[#allocation5 + $0x18] sm:$0xf]
    %v68 = vld [vmem:[#allocation5 + $0x1c] sm:$0xf]
    %v69 = vld [vmem:[#allocation5 + $0x20] sm:$0xf]
    %v70 = vld [vmem:[#allocation5 + $0x24] sm:$0xf]
    %v71 = vld [vmem:[#allocation5 + $0x28] sm:$0xf]
    %v72 = vld [vmem:[#allocation5 + $0x2c] sm:$0xf]
    %v73 = vld [vmem:[#allocation5 + $0x30] sm:$0xf]
    %v74 = vld [vmem:[#allocation5 + $0x34] sm:$0xf]
    %v75 = vld [vmem:[#allocation5 + $0x38] sm:$0xf]
    %v76 = vld [vmem:[#allocation5 + $0x3c] sm:$0xf]
    %v77 = vld [vmem:[#allocation5 + $0x40] sm:$0xf]
    %v78 = vld [vmem:[#allocation5 + $0x44] sm:$0xf]
    %v79 = vld [vmem:[#allocation5 + $0x48] sm:$0xf]
    %v80 = vld [vmem:[#allocation5 + $0x4c] sm:$0xf]
    %v81 = vld [vmem:[#allocation5 + $0x50] sm:$0xf]
    %v82 = vld [vmem:[#allocation5 + $0x54] sm:$0xf]
    %v83 = vld [vmem:[#allocation5 + $0x58] sm:$0xf]
    %v84 = vld [vmem:[#allocation5 + $0x5c] sm:$0xf]
    %v85 = vld [vmem:[#allocation5 + $0x60] sm:$0xf]
    %v86 = vld [vmem:[#allocation5 + $0x64] sm:$0xf]
    %v87 = vld [vmem:[#allocation5 + $0x68] sm:$0xf]
    %v88 = vld [vmem:[#allocation5 + $0x6c] sm:$0xf]
    %v89 = vld [vmem:[#allocation5 + $0x70] sm:$0xf]
    %v90 = vld [vmem:[#allocation5 + $0x74] sm:$0xf]
    %v91 = vld [vmem:[#allocation5 + $0x78] sm:$0xf]
    %v92 = vld [vmem:[#allocation5 + $0x7c] sm:$0xf]
    %v93 = vld [vmem:[#allocation5 + $0x80] sm:$0xf]
    %v94 = vld [vmem:[#allocation5 + $0x84] sm:$0xf]
    %v95 = vld [vmem:[#allocation5 + $0x88] sm:$0xf]
    %v96 = vld [vmem:[#allocation5 + $0x8c] sm:$0xf]
    %v97 = vld [vmem:[#allocation5 + $0x90] sm:$0xf]
    %v98 = vld [vmem:[#allocation5 + $0x94] sm:$0xf]
    %v99 = vld [vmem:[#allocation5 + $0x98] sm:$0xf]
    %v100 = vld [vmem:[#allocation5 + $0x9c] sm:$0xf]
    %v101 = vld [vmem:[#allocation5 + $0xa0] sm:$0xf]
    %v102 = vld [vmem:[#allocation5 + $0xa4] sm:$0xf]
    %v103 = vld [vmem:[#allocation5 + $0xa8] sm:$0xf]
    %v104 = vld [vmem:[#allocation5 + $0xac] sm:$0xf]
    %v105 = vld [vmem:[#allocation5 + $0xb0] sm:$0xf]
    %v106 = vld [vmem:[#allocation5 + $0xb4] sm:$0xf]
    %v107 = vld [vmem:[#allocation5 + $0xb8] sm:$0xf]
    %v108 = vld [vmem:[#allocation5 + $0xbc] sm:$0xf]
    %v109 = vld [vmem:[#allocation5 + $0xc0] sm:$0xf]
    %v110 = vld [vmem:[#allocation5 + $0xc4] sm:$0xf]
    %v111 = vld [vmem:[#allocation5 + $0xc8] sm:$0xf]
    %v112 = vld [vmem:[#allocation5 + $0xcc] sm:$0xf]
    %v113 = vld [vmem:[#allocation5 + $0xd0] sm:$0xf]
    %v114 = vld [vmem:[#allocation5 + $0xd4] sm:$0xf]
    %v115 = vld [vmem:[#allocation5 + $0xd8] sm:$0xf]
    %v116 = vld [vmem:[#allocation5 + $0xdc] sm:$0xf]
    %v117 = vld [vmem:[#allocation5 + $0xe0] sm:$0xf]
    %v118 = vld [vmem:[#allocation5 + $0xe4] sm:$0xf]
    %v119 = vld [vmem:[#allocation5 + $0xe8] sm:$0xf]
    %v120 = vld [vmem:[#allocation5 + $0xec] sm:$0xf]
    %v121 = vld [vmem:[#allocation5 + $0xf0] sm:$0xf]
    %v122 = vld [vmem:[#allocation5 + $0xf4] sm:$0xf]
    %v123 = vld [vmem:[#allocation5 + $0xf8] sm:$0xf]
    %v124 = vld [vmem:[#allocation5 + $0xfc] sm:$0xf]
    %v125 = vld [vmem:[#allocation5 + $0x100] sm:$0xf]
    %v126 = vld [vmem:[#allocation5 + $0x104] sm:$0xf]
    %v127 = vld [vmem:[#allocation5 + $0x108] sm:$0xf]
    %v128 = vld [vmem:[#allocation5 + $0x10c] sm:$0xf]
    %v129 = vld [vmem:[#allocation5 + $0x110] sm:$0xf]
    %v130 = vld [vmem:[#allocation5 + $0x114] sm:$0xf]
    %v131 = vld [vmem:[#allocation5 + $0x118] sm:$0xf]
    %v132 = vld [vmem:[#allocation5 + $0x11c] sm:$0xf]
    %v133 = vld [vmem:[#allocation5 + $0x120] sm:$0xf]
    %v134 = vld [vmem:[#allocation5 + $0x124] sm:$0xf]
    %v135 = vld [vmem:[#allocation5 + $0x128] sm:$0xf]
    %v136 = vld [vmem:[#allocation5 + $0x12c] sm:$0xf]
    %v137 = vld [vmem:[#allocation5 + $0x130] sm:$0xf]
    %v138 = vld [vmem:[#allocation5 + $0x134] sm:$0xf]
    %v139 = vld [vmem:[#allocation5 + $0x138] sm:$0xf]
    %v140 = vld [vmem:[#allocation5 + $0x13c] sm:$0xf]
    %v141 = vld [vmem:[#allocation5 + $0x140] sm:$0xf]
    %v142 = vld [vmem:[#allocation5 + $0x144] sm:$0xf]
    %v143 = vld [vmem:[#allocation5 + $0x148] sm:$0xf]
    %v144 = vld [vmem:[#allocation5 + $0x14c] sm:$0xf]
    %v145 = vld [vmem:[#allocation5 + $0x150] sm:$0xf]
    %v146 = vld [vmem:[#allocation5 + $0x154] sm:$0xf]
    %v147 = vld [vmem:[#allocation5 + $0x158] sm:$0xf]
    %v148 = vld [vmem:[#allocation5 + $0x15c] sm:$0xf]
    %v149 = vld [vmem:[#allocation5 + $0x160] sm:$0xf]
    %v150 = vld [vmem:[#allocation5 + $0x164] sm:$0xf]
    %v151 = vld [vmem:[#allocation5 + $0x168] sm:$0xf]
    %v152 = vld [vmem:[#allocation5 + $0x16c] sm:$0xf]
    %v153 = vld [vmem:[#allocation5 + $0x170] sm:$0xf]
    %v154 = vld [vmem:[#allocation5 + $0x174] sm:$0xf]
    %v155 = vld [vmem:[#allocation5 + $0x178] sm:$0xf]
    %v156 = vld [vmem:[#allocation5 + $0x17c] sm:$0xf]
    %v157 = vld [vmem:[#allocation7] sm:$0x1]
    %v158 = vlaneseq
    %v159 = vshrl.u32 %v158, 7
    %v160 = vsub.s32 0, %v159
    %v161 = vrot.slane %v157, %v160
    %v168 = vunpack.c.l.b16 %v55
    %v169 = vunpack.c.h.b16 %v55
    %v170 = vunpack.c.l.b16 %v56
    %v171 = vunpack.c.h.b16 %v56
    %v172 = vunpack.c.l.b16 %v57
    %v173 = vunpack.c.h.b16 %v57
    %v174 = vunpack.c.l.b16 %v58
    %v175 = vunpack.c.h.b16 %v58
    %v176 = vunpack.c.l.b16 %v59
    %v177 = vunpack.c.h.b16 %v59
    %v178 = vunpack.c.l.b16 %v60
    %v179 = vunpack.c.h.b16 %v60
    %v180 = vpack.c.b16 %v174, %v168
    %v181 = vpack.c.b16 %v175, %v169
    %v182 = vpack.c.b16 %v176, %v170
    %v183 = vpack.c.b16 %v177, %v171
    %v184 = vpack.c.b16 %v178, %v172
    %v185 = vpack.c.b16 %v179, %v173
    %v288 = vunpack.c.l.b16 %v61
    %v289 = vunpack.c.l.b16 %v62
    %v290 = vunpack.c.l.b16 %v63
    %v291 = vunpack.c.l.b16 %v64
    %v292 = vunpack.c.l.b16 %v65
    %v293 = vunpack.c.l.b16 %v66
    %v294 = vunpack.c.l.b16 %v67
    %v295 = vunpack.c.l.b16 %v68
    %v296 = vunpack.c.l.b16 %v69
    %v297 = vunpack.c.l.b16 %v70
    %v298 = vunpack.c.l.b16 %v71
    %v299 = vunpack.c.l.b16 %v72
    %v300 = vunpack.c.l.b16 %v73
    %v301 = vunpack.c.l.b16 %v74
    %v302 = vunpack.c.l.b16 %v75
    %v303 = vunpack.c.l.b16 %v76
    %v304 = vunpack.c.l.b16 %v77
    %v305 = vunpack.c.l.b16 %v78
    %v306 = vunpack.c.l.b16 %v79
    %v307 = vunpack.c.l.b16 %v80
    %v308 = vunpack.c.l.b16 %v81
    %v309 = vunpack.c.l.b16 %v82
    %v310 = vunpack.c.l.b16 %v83
    %v311 = vunpack.c.l.b16 %v84
    %v312 = vunpack.c.l.b16 %v85
    %v313 = vunpack.c.l.b16 %v86
    %v314 = vunpack.c.l.b16 %v87
    %v315 = vunpack.c.l.b16 %v88
    %v316 = vunpack.c.l.b16 %v89
    %v317 = vunpack.c.l.b16 %v90
    %v318 = vunpack.c.l.b16 %v91
    %v319 = vunpack.c.l.b16 %v92
    %v320 = vunpack.c.l.b16 %v93
    %v321 = vunpack.c.l.b16 %v94
    %v322 = vunpack.c.l.b16 %v95
    %v323 = vunpack.c.l.b16 %v96
    %v324 = vunpack.c.l.b16 %v97
    %v325 = vunpack.c.l.b16 %v98
    %v326 = vunpack.c.l.b16 %v99
    %v327 = vunpack.c.l.b16 %v100
    %v328 = vunpack.c.l.b16 %v101
    %v329 = vunpack.c.l.b16 %v102
    %v330 = vunpack.c.l.b16 %v103
    %v331 = vunpack.c.l.b16 %v104
    %v332 = vunpack.c.l.b16 %v105
    %v333 = vunpack.c.l.b16 %v106
    %v334 = vunpack.c.l.b16 %v107
    %v335 = vunpack.c.l.b16 %v108
    %v336 = vunpack.c.l.b16 %v109
    %v337 = vunpack.c.l.b16 %v110
    %v338 = vunpack.c.l.b16 %v111
    %v339 = vunpack.c.l.b16 %v112
    %v340 = vunpack.c.l.b16 %v113
    %v341 = vunpack.c.l.b16 %v114
    %v342 = vunpack.c.l.b16 %v115
    %v343 = vunpack.c.l.b16 %v116
    %v344 = vunpack.c.l.b16 %v117
    %v345 = vunpack.c.l.b16 %v118
    %v346 = vunpack.c.l.b16 %v119
    %v347 = vunpack.c.l.b16 %v120
    %v348 = vunpack.c.l.b16 %v121
    %v349 = vunpack.c.l.b16 %v122
    %v350 = vunpack.c.l.b16 %v123
    %v351 = vunpack.c.l.b16 %v124
    %v352 = vunpack.c.l.b16 %v125
    %v353 = vunpack.c.l.b16 %v126
    %v354 = vunpack.c.l.b16 %v127
    %v355 = vunpack.c.l.b16 %v128
    %v356 = vunpack.c.l.b16 %v129
    %v357 = vunpack.c.l.b16 %v130
    %v358 = vunpack.c.l.b16 %v131
    %v359 = vunpack.c.l.b16 %v132
    %v360 = vunpack.c.l.b16 %v133
    %v361 = vunpack.c.l.b16 %v134
    %v362 = vunpack.c.l.b16 %v135
    %v363 = vunpack.c.l.b16 %v136
    %v364 = vunpack.c.l.b16 %v137
    %v365 = vunpack.c.l.b16 %v138
    %v366 = vunpack.c.l.b16 %v139
    %v367 = vunpack.c.l.b16 %v140
    %v368 = vunpack.c.l.b16 %v141
    %v369 = vunpack.c.l.b16 %v142
    %v370 = vunpack.c.l.b16 %v143
    %v371 = vunpack.c.l.b16 %v144
    %v372 = vunpack.c.l.b16 %v145
    %v373 = vunpack.c.l.b16 %v146
    %v374 = vunpack.c.l.b16 %v147
    %v375 = vunpack.c.l.b16 %v148
    %v376 = vunpack.c.l.b16 %v149
    %v377 = vunpack.c.l.b16 %v150
    %v378 = vunpack.c.l.b16 %v151
    %v379 = vunpack.c.l.b16 %v152
    %v380 = vunpack.c.l.b16 %v153
    %v381 = vunpack.c.l.b16 %v154
    %v382 = vunpack.c.l.b16 %v155
    %v383 = vunpack.c.l.b16 %v156
    %v384 = vpack.c.b16 %v289, %v288
    %v385 = vpack.c.b16 %v291, %v290
    %v386 = vpack.c.b16 %v293, %v292
    %v387 = vpack.c.b16 %v295, %v294
    %v388 = vpack.c.b16 %v297, %v296
    %v389 = vpack.c.b16 %v299, %v298
    %v390 = vpack.c.b16 %v301, %v300
    %v391 = vpack.c.b16 %v303, %v302
    %v392 = vpack.c.b16 %v305, %v304
    %v393 = vpack.c.b16 %v307, %v306
    %v394 = vpack.c.b16 %v309, %v308
    %v395 = vpack.c.b16 %v311, %v310
    %v396 = vpack.c.b16 %v313, %v312
    %v397 = vpack.c.b16 %v315, %v314
    %v398 = vpack.c.b16 %v317, %v316
    %v399 = vpack.c.b16 %v319, %v318
    %v400 = vpack.c.b16 %v321, %v320
    %v401 = vpack.c.b16 %v323, %v322
    %v402 = vpack.c.b16 %v325, %v324
    %v403 = vpack.c.b16 %v327, %v326
    %v404 = vpack.c.b16 %v329, %v328
    %v405 = vpack.c.b16 %v331, %v330
    %v406 = vpack.c.b16 %v333, %v332
    %v407 = vpack.c.b16 %v335, %v334
    %v408 = vpack.c.b16 %v337, %v336
    %v409 = vpack.c.b16 %v339, %v338
    %v410 = vpack.c.b16 %v341, %v340
    %v411 = vpack.c.b16 %v343, %v342
    %v412 = vpack.c.b16 %v345, %v344
    %v413 = vpack.c.b16 %v347, %v346
    %v414 = vpack.c.b16 %v349, %v348
    %v415 = vpack.c.b16 %v351, %v350
    %v416 = vpack.c.b16 %v353, %v352
    %v417 = vpack.c.b16 %v355, %v354
    %v418 = vpack.c.b16 %v357, %v356
    %v419 = vpack.c.b16 %v359, %v358
    %v420 = vpack.c.b16 %v361, %v360
    %v421 = vpack.c.b16 %v363, %v362
    %v422 = vpack.c.b16 %v365, %v364
    %v423 = vpack.c.b16 %v367, %v366
    %v424 = vpack.c.b16 %v369, %v368
    %v425 = vpack.c.b16 %v371, %v370
    %v426 = vpack.c.b16 %v373, %v372
    %v427 = vpack.c.b16 %v375, %v374
    %v428 = vpack.c.b16 %v377, %v376
    %v429 = vpack.c.b16 %v379, %v378
    %v430 = vpack.c.b16 %v381, %v380
    %v431 = vpack.c.b16 %v383, %v382
    %480 = vmatprep.subr.bf16.mxu0 0
    %481 = vmatpush1.bf16.msra.mxu0 %v384
    %482 = vmatprep.subr.bf16.mxu0 0
    %483 = vmatpush1.bf16.msra.mxu0 %v385
    %484 = vmatprep.subr.bf16.mxu0 0
    %485 = vmatpush1.bf16.msra.mxu0 %v386
    %486 = vmatprep.subr.bf16.mxu0 0
    %487 = vmatpush1.bf16.msra.mxu0 %v387
    %488 = vmatprep.subr.bf16.mxu0 0
    %489 = vmatpush1.bf16.msra.mxu0 %v388
    %490 = vmatprep.subr.bf16.mxu0 0
    %491 = vmatpush1.bf16.msra.mxu0 %v389
    %492 = vmatprep.subr.bf16.mxu0 0
    %493 = vmatpush1.bf16.msra.mxu0 %v390
    %494 = vmatprep.subr.bf16.mxu0 0
    %495 = vmatpush1.bf16.msra.mxu0 %v391
    %496 = vmatprep.subr.bf16.mxu0 0
    %497 = vmatpush1.bf16.msra.mxu0 %v392
    %498 = vmatprep.subr.bf16.mxu0 0
    %499 = vmatpush1.bf16.msra.mxu0 %v393
    %500 = vmatprep.subr.bf16.mxu0 0
    %501 = vmatpush1.bf16.msra.mxu0 %v394
    %502 = vmatprep.subr.bf16.mxu0 0
    %503 = vmatpush1.bf16.msra.mxu0 %v395
    %504 = vmatprep.subr.bf16.mxu0 0
    %505 = vmatpush1.bf16.msra.mxu0 %v396
    %506 = vmatprep.subr.bf16.mxu0 0
    %507 = vmatpush1.bf16.msra.mxu0 %v397
    %508 = vmatprep.subr.bf16.mxu0 0
    %509 = vmatpush1.bf16.msra.mxu0 %v398
    %510 = vmatprep.subr.bf16.mxu0 0
    %511 = vmatpush1.bf16.msra.mxu0 %v399
    %512 = vmatprep.mubr.bf16.mxu0 %v181
    %513 = vmatmul.mubr.bf16.gmra.mrb[0].mxu0 %v180
    %v514 = vpop.f32.mrb[0].mxu0
    %v515 = vadd.f32 %v161, %v514
    %v516 = vpop.f32.mrb[0].mxu0
    %v517 = vpop.f32.mrb[0].mxu0
    %v518 = vadd.f32 %v161, %v517
    %v519 = vpop.f32.mrb[0].mxu0
    %520 = vdwg.mxu0
    %521 = vmatprep.subr.bf16.mxu0 0
    %522 = vmatpush1.bf16.msra.mxu0 %v400
    %523 = vmatprep.subr.bf16.mxu0 0
    %524 = vmatpush1.bf16.msra.mxu0 %v401
    %525 = vmatprep.subr.bf16.mxu0 0
    %526 = vmatpush1.bf16.msra.mxu0 %v402
    %527 = vmatprep.subr.bf16.mxu0 0
    %528 = vmatpush1.bf16.msra.mxu0 %v403
    %529 = vmatprep.subr.bf16.mxu0 0
    %530 = vmatpush1.bf16.msra.mxu0 %v404
    %531 = vmatprep.subr.bf16.mxu0 0
    %532 = vmatpush1.bf16.msra.mxu0 %v405
    %533 = vmatprep.subr.bf16.mxu0 0
    %534 = vmatpush1.bf16.msra.mxu0 %v406
    %535 = vmatprep.subr.bf16.mxu0 0
    %536 = vmatpush1.bf16.msra.mxu0 %v407
    %537 = vmatprep.subr.bf16.mxu0 0
    %538 = vmatpush1.bf16.msra.mxu0 %v408
    %539 = vmatprep.subr.bf16.mxu0 0
    %540 = vmatpush1.bf16.msra.mxu0 %v409
    %541 = vmatprep.subr.bf16.mxu0 0
    %542 = vmatpush1.bf16.msra.mxu0 %v410
    %543 = vmatprep.subr.bf16.mxu0 0
    %544 = vmatpush1.bf16.msra.mxu0 %v411
    %545 = vmatprep.subr.bf16.mxu0 0
    %546 = vmatpush1.bf16.msra.mxu0 %v412
    %547 = vmatprep.subr.bf16.mxu0 0
    %548 = vmatpush1.bf16.msra.mxu0 %v413
    %549 = vmatprep.subr.bf16.mxu0 0
    %550 = vmatpush1.bf16.msra.mxu0 %v414
    %551 = vmatprep.subr.bf16.mxu0 0
    %552 = vmatpush1.bf16.msra.mxu0 %v415
    %553 = vmatprep.mubr.bf16.mxu0 %v183
    %554 = vmatmul.mubr.bf16.gmra.mrb[0].mxu0 %v182
    %v555 = vpop.f32.mrb[0].mxu0
    %v556 = vadd.f32 %v515, %v555
    %v557 = vpop.f32.mrb[0].mxu0
    %v558 = vpop.f32.mrb[0].mxu0
    %v559 = vadd.f32 %v518, %v558
    %v560 = vpop.f32.mrb[0].mxu0
    %561 = vdwg.mxu0
    %562 = vmatprep.subr.bf16.mxu0 0
    %563 = vmatpush1.bf16.msra.mxu0 %v416
    %564 = vmatprep.subr.bf16.mxu0 0
    %565 = vmatpush1.bf16.msra.mxu0 %v417
    %566 = vmatprep.subr.bf16.mxu0 0
    %567 = vmatpush1.bf16.msra.mxu0 %v418
    %568 = vmatprep.subr.bf16.mxu0 0
    %569 = vmatpush1.bf16.msra.mxu0 %v419
    %570 = vmatprep.subr.bf16.mxu0 0
    %571 = vmatpush1.bf16.msra.mxu0 %v420
    %572 = vmatprep.subr.bf16.mxu0 0
    %573 = vmatpush1.bf16.msra.mxu0 %v421
    %574 = vmatprep.subr.bf16.mxu0 0
    %575 = vmatpush1.bf16.msra.mxu0 %v422
    %576 = vmatprep.subr.bf16.mxu0 0
    %577 = vmatpush1.bf16.msra.mxu0 %v423
    %578 = vmatprep.subr.bf16.mxu0 0
    %579 = vmatpush1.bf16.msra.mxu0 %v424
    %580 = vmatprep.subr.bf16.mxu0 0
    %581 = vmatpush1.bf16.msra.mxu0 %v425
    %582 = vmatprep.subr.bf16.mxu0 0
    %583 = vmatpush1.bf16.msra.mxu0 %v426
    %584 = vmatprep.subr.bf16.mxu0 0
    %585 = vmatpush1.bf16.msra.mxu0 %v427
    %586 = vmatprep.subr.bf16.mxu0 0
    %587 = vmatpush1.bf16.msra.mxu0 %v428
    %588 = vmatprep.subr.bf16.mxu0 0
    %589 = vmatpush1.bf16.msra.mxu0 %v429
    %590 = vmatprep.subr.bf16.mxu0 0
    %591 = vmatpush1.bf16.msra.mxu0 %v430
    %592 = vmatprep.subr.bf16.mxu0 0
    %593 = vmatpush1.bf16.msra.mxu0 %v431
    %594 = vmatprep.mubr.bf16.mxu0 %v185
    %595 = vmatmul.mubr.bf16.gmra.mrb[0].mxu0 %v184
    %v596 = vpop.f32.mrb[0].mxu0
    %v597 = vadd.f32 %v556, %v596
    %v598 = vpop.f32.mrb[0].mxu0
    %v599 = vpop.f32.mrb[0].mxu0
    %v600 = vadd.f32 %v559, %v599
    %v601 = vpop.f32.mrb[0].mxu0
    %602 = vdwg.mxu0
    %v603 = vxor.u32 %v597, 2147483648
    %v604 = vxor.u32 %v600, 2147483648
    %v605 = vmul.f32 %v603, 1.442695
    %v606 = vpow.pop %v605
    %v607 = vmul.f32 %v604, 1.442695
    %v608 = vpow.pop %v607
    %v609 = vadd.f32 %v606, 1.0
    %v610 = vadd.f32 %v608, 1.0
    %v611 = vrcp.pop %v609
    %v612 = vmul.f32 1.0, %v611
    %v613 = vrcp.pop %v610
    %v614 = vmul.f32 1.0, %v613
    %v615 = vld [vmem:[#allocation7 + $0x1] sm:$0x1]
    %v616 = vlaneseq
    %v617 = vshrl.u32 %v616, 7
    %v618 = vsub.s32 0, %v617
    %v619 = vrot.slane %v615, %v618
    %v620 = vmul.f32 %v612, %v619
    %v621 = vmul.f32 %v614, %v619
    %624 = vrot.lane.b32.xlu0 %v620, 64
    %v625 = vpop.permute.xlu0 %624
    %626 = vrot.lane.b32.xlu0 %v621, 64
    %v627 = vpop.permute.xlu0 %626
    %v630 = vadd.f32 %v597, %v625
    %v631 = vadd.f32 %v600, %v627
    %v632 = vtanh.pop %v630
    %v633 = vtanh.pop %v631
    %v634 = vsub.f32 1.0, %v612
    %v635 = vsub.f32 1.0, %v614
    %638 = vrot.lane.b32.xlu0 %v632, 96
    %v639 = vpop.permute.xlu0 %638
    %640 = vrot.lane.b32.xlu0 %v633, 96
    %v641 = vpop.permute.xlu0 %640
    %v644 = vmul.f32 %v634, %v639
    %v645 = vmul.f32 %v635, %v641
    %v646 = vpack.c.bf16 %v644, %v644
    %v647 = vpack.c.bf16 %v645, %v645
    %v648 = vld [vmem:[#allocation5 + $0x180] sm:$0xf]
    %v649 = vld [vmem:[#allocation5 + $0x184] sm:$0xf]
    %v650 = vld [vmem:[#allocation5 + $0x188] sm:$0xf]
    %v651 = vld [vmem:[#allocation5 + $0x18c] sm:$0xf]
    %v652 = vld [vmem:[#allocation5 + $0x190] sm:$0xf]
    %v653 = vld [vmem:[#allocation5 + $0x194] sm:$0xf]
    %v654 = vld [vmem:[#allocation5 + $0x198] sm:$0xf]
    %v655 = vld [vmem:[#allocation5 + $0x19c] sm:$0xf]
    %657 = vrot.lane.b32.xlu0 %v647, 96
    %v658 = vpop.permute.xlu0 %657
    %v663 = vunpack.c.l.b16 %v652
    %v664 = vunpack.c.l.b16 %v653
    %v665 = vunpack.c.l.b16 %v654
    %v666 = vunpack.c.l.b16 %v655
    %v667 = vpack.c.b16 %v664, %v663
    %v668 = vpack.c.b16 %v666, %v665
    %vm671 = vcmask 261120
    %v673 = vsel %vm671, %v658, 0
    %675 = vmatprep.subr.bf16.mxu0 0
    %676 = vmatpush1.bf16.msra.mxu0 %v667
    %677 = vmatprep.subr.bf16.mxu0 0
    %678 = vmatpush1.bf16.msra.mxu0 %v668
    %679 = vmatprep.subr.bf16.mxu0 0
    %680 = vmatpush1.bf16.msra.mxu0 0
    %681 = vmatprep.subr.bf16.mxu0 0
    %682 = vmatpush1.bf16.msra.mxu0 0
    %683 = vmatprep.subr.bf16.mxu0 0
    %684 = vmatpush1.bf16.msra.mxu0 0
    %685 = vmatprep.subr.bf16.mxu0 0
    %686 = vmatpush1.bf16.msra.mxu0 0
    %687 = vmatprep.subr.bf16.mxu0 0
    %688 = vmatpush1.bf16.msra.mxu0 0
    %689 = vmatprep.subr.bf16.mxu0 0
    %690 = vmatpush1.bf16.msra.mxu0 0
    %691 = vmatprep.subr.bf16.mxu0 0
    %692 = vmatpush1.bf16.msra.mxu0 0
    %693 = vmatprep.subr.bf16.mxu0 0
    %694 = vmatpush1.bf16.msra.mxu0 0
    %695 = vmatprep.subr.bf16.mxu0 0
    %696 = vmatpush1.bf16.msra.mxu0 0
    %697 = vmatprep.subr.bf16.mxu0 0
    %698 = vmatpush1.bf16.msra.mxu0 0
    %699 = vmatprep.subr.bf16.mxu0 0
    %700 = vmatpush1.bf16.msra.mxu0 0
    %701 = vmatprep.subr.bf16.mxu0 0
    %702 = vmatpush1.bf16.msra.mxu0 0
    %703 = vmatprep.subr.bf16.mxu0 0
    %704 = vmatpush1.bf16.msra.mxu0 0
    %705 = vmatprep.subr.bf16.mxu0 0
    %706 = vmatpush1.bf16.msra.mxu0 0
    %707 = vmatprep.mubr.bf16.mxu0 0
    %708 = vmatmul.mubr.bf16.gmra.mrb[0].mxu0 %v673
    %v709 = vpop.f32.mrb[0].mxu0
    %v710 = vadd.f32 0.0, %v709
    %v711 = vpop.f32.mrb[0].mxu0
    %v712 = vpop.f32.mrb[0].mxu0
    %v713 = vpop.f32.mrb[0].mxu0
    %714 = vdwg.mxu0
    %716 = vrot.lane.b32.xlu0 %v646, 96
    %v717 = vpop.permute.xlu0 %716
    %v722 = vunpack.c.l.b16 %v648
    %v723 = vunpack.c.l.b16 %v649
    %v724 = vunpack.c.l.b16 %v650
    %v725 = vunpack.c.l.b16 %v651
    %v726 = vpack.c.b16 %v723, %v722
    %v727 = vpack.c.b16 %v725, %v724
    %v731 = vsel %vm671, %v717, 0
    %733 = vmatprep.subr.bf16.mxu0 0
    %734 = vmatpush1.bf16.msra.mxu0 %v726
    %735 = vmatprep.subr.bf16.mxu0 0
    %736 = vmatpush1.bf16.msra.mxu0 %v727
    %737 = vmatprep.subr.bf16.mxu0 0
    %738 = vmatpush1.bf16.msra.mxu0 0
    %739 = vmatprep.subr.bf16.mxu0 0
    %740 = vmatpush1.bf16.msra.mxu0 0
    %741 = vmatprep.subr.bf16.mxu0 0
    %742 = vmatpush1.bf16.msra.mxu0 0
    %743 = vmatprep.subr.bf16.mxu0 0
    %744 = vmatpush1.bf16.msra.mxu0 0
    %745 = vmatprep.subr.bf16.mxu0 0
    %746 = vmatpush1.bf16.msra.mxu0 0
    %747 = vmatprep.subr.bf16.mxu0 0
    %748 = vmatpush1.bf16.msra.mxu0 0
    %749 = vmatprep.subr.bf16.mxu0 0
    %750 = vmatpush1.bf16.msra.mxu0 0
    %751 = vmatprep.subr.bf16.mxu0 0
    %752 = vmatpush1.bf16.msra.mxu0 0
    %753 = vmatprep.subr.bf16.mxu0 0
    %754 = vmatpush1.bf16.msra.mxu0 0
    %755 = vmatprep.subr.bf16.mxu0 0
    %756 = vmatpush1.bf16.msra.mxu0 0
    %757 = vmatprep.subr.bf16.mxu0 0
    %758 = vmatpush1.bf16.msra.mxu0 0
    %759 = vmatprep.subr.bf16.mxu0 0
    %760 = vmatpush1.bf16.msra.mxu0 0
    %761 = vmatprep.subr.bf16.mxu0 0
    %762 = vmatpush1.bf16.msra.mxu0 0
    %763 = vmatprep.subr.bf16.mxu0 0
    %764 = vmatpush1.bf16.msra.mxu0 0
    %765 = vmatprep.mubr.bf16.mxu0 0
    %766 = vmatmul.mubr.bf16.gmra.mrb[0].mxu0 %v731
    %v767 = vpop.f32.mrb[0].mxu0
    %v768 = vadd.f32 %v710, %v767
    %v769 = vpop.f32.mrb[0].mxu0
    %v770 = vpop.f32.mrb[0].mxu0
    %v771 = vpop.f32.mrb[0].mxu0
    %772 = vdwg.mxu0
    %v773 = vld [vmem:[#allocation7 + $0x2] sm:$0x1]
    %v774 = vlaneseq
    %v775 = vshrl.u32 %v774, 7
    %v776 = vsub.s32 0, %v775
    %v777 = vrot.slane %v773, %v776
    %v778 = vadd.f32 %v768, %v777
    %779 = vst [vmem:[#allocation8] sm:$0xff] %v778
    // Predicated region
    $region26: #{tpu_custom_call.1} parent=1 // pred_check
      _
    $region27: #{tpu_custom_call.1} parent=1 // pred_check_branch
      %781 = sbr.rel (0) target = $region29
    $region28: #{tpu_custom_call.1} parent=1 // pred_region
      %s783 = ssub.s32 128, 128
      %784 = vsyncadd [#allocation4], %s783
      %s786 = sshll.u32 [#allocation8], 4
      %s787 = int_to_ptr.vmem [resolvable:$true] %s786
      %789 = dma.vmem_to_hbm [thread:$0]  %s787, 128, %s3, [#allocation4]
    $region29: #{tpu_custom_call.1} parent=1 // pred_fallthru
      _
    // Predicated region
    $region30: #{tpu_custom_call.1} parent=1 // pred_check
      _
    $region31: #{tpu_custom_call.1} parent=1 // pred_check_branch
      %791 = sbr.rel (0) target = $region33
    $region32: #{tpu_custom_call.1} parent=1 // pred_region
      %792 = dma.done [#allocation4], 128
    $region33: #{tpu_custom_call.1} parent=1 // pred_fallthru
      _
    %793 = vsyncpa [#allocation3], 1
    %794 = vsyncpa [#allocation6], 1
    %795 = vsyncpa [#allocation4], 1

</llo_original>
